<compile_context>
chip_gen: v6e
topology: v6e:2x2x1
jax: 0.10.0
libtpu: 0.0.40
codegen_flags: <defaults>
</compile_context>

<pallas_src>
import jax
import jax.numpy as jnp
from jax.experimental import pallas as pl
from jax.experimental.pallas import tpu as pltpu


# ----------------------------------------------------------------------------
# Model constants
# ----------------------------------------------------------------------------
MODALITY_NAMES = ("m1", "m2")
MOD_IN_CHANNELS = {"m1": 8, "m2": 6}
IN_HEAD = 32            # args['in_head']
ANCHOR_NUMBER = 2       # args['anchor_number']
NUM_BINS = 2            # args['dir_args']['num_bins']
H, W = 16, 16
CIN_PAD = ((max(MOD_IN_CHANNELS.values()) + 7) // 8) * 8       # 8, sublane-aligned Cin
SLAB = ((IN_HEAD + 1 + 7) // 8) * 8                             # 40: 32 feat + 1 occ + pad


# ----------------------------------------------------------------------------
# Fused Pallas kernel
# ----------------------------------------------------------------------------
def _collab_kernel(x_ref, wbd_ref, bbd_ref, hw_ref, hb_ref, occ_ref, heads_ref):
    # x:   (N*CIN_PAD, S)   stacked agent inputs, spatial (S=H*W) on the lanes
    # wbd: (N*SLAB, N*CIN_PAD)  block-diagonal projection (+folded occ row)
    # bbd: (N*SLAB, 1)
    # hw:  (HC, K)  heads weights with the shrink conv folded in
    # hb:  (HC, 1)
    n_agents = occ_ref.shape[0]

    # One block-diagonal MXU matmul covers every agent's encoder/backbone/
    # aligner proxy AND its occupancy logit row.
    z = jnp.dot(wbd_ref[...], x_ref[...],
                preferred_element_type=jnp.float32) + bbd_ref[...]   # (N*SLAB, S)

    # 8-sublane-aligned static slices (SLAB = 40, IN_HEAD = 32).
    feats = [z[n * SLAB: n * SLAB + IN_HEAD, :] for n in range(n_agents)]        # (K, S)
    scores = [z[n * SLAB + IN_HEAD: n * SLAB + IN_HEAD + 1, :]
              for n in range(n_agents)]                                           # (1, S)

    # Collaborative weighting: per-pixel softmax over the agent axis (N small,
    # statically unrolled).  Reciprocal goes to the EUP slot.
    m = scores[0]
    for s in scores[1:]:
        m = jnp.maximum(m, s)
    es = [jnp.exp(s - m) for s in scores]
    tot = es[0]
    for e in es[1:]:
        tot = tot + e
    inv = pl.reciprocal(tot, approx=True)

    fused = (es[0] * inv) * feats[0]
    for e, f in zip(es[1:], feats[1:]):
        fused = fused + (e * inv) * f                                              # (K, S)

    # Shrink conv + cls/reg/dir heads, pre-folded into one (HC, K) matmul.
    heads = jnp.dot(hw_ref[...], fused,
                    preferred_element_type=jnp.float32) + hb_ref[...]             # (HC, S)

    for n in range(n_agents):
        occ_ref[n:n + 1, :] = scores[n].astype(occ_ref.dtype)
    heads_ref[...] = heads.astype(heads_ref.dtype)


def pyramid_collab_fused(x_bd, w_bd, b_bd, heads_wT, heads_bT, *, n_agents):
    """Single-step fused call: block-diag projection + fusion + folded heads."""
    S = x_bd.shape[1]
    HC = heads_wT.shape[0]
    vmem = pl.BlockSpec(memory_space=pltpu.MemorySpace.VMEM)
    occ, heads = pl.pallas_call(
        _collab_kernel,
        out_shape=(
            jax.ShapeDtypeStruct((n_agents, S), jnp.float32),
            jax.ShapeDtypeStruct((HC, S), jnp.float32),
        ),
        in_specs=[vmem, vmem, vmem, vmem, vmem],
        out_specs=(vmem, vmem),
    )(x_bd, w_bd, b_bd, heads_wT, heads_bT)
    return occ, heads


# ----------------------------------------------------------------------------
# Parameters
# ----------------------------------------------------------------------------
def init_params(key):
    ks = jax.random.split(key, 16)
    p = {}
    i = 0

    def nrm(k, shape, scale=0.05):
        return (scale * jax.random.normal(k, shape)).astype(jnp.float32)

    # encoder+backbone+aligner proxy per modality: Cin_m -> IN_HEAD (1x1 conv)
    for m in MODALITY_NAMES:
        p[f"proj_w_{m}"] = nrm(ks[i], (MOD_IN_CHANNELS[m], IN_HEAD)); i += 1
        p[f"proj_b_{m}"] = nrm(ks[i], (IN_HEAD,)); i += 1
    # pyramid fusion occupancy head: IN_HEAD -> 1
    p["occ_w"] = nrm(ks[i], (IN_HEAD, 1)); i += 1
    p["occ_b"] = nrm(ks[i], (1,)); i += 1
    # shrink conv proxy: IN_HEAD -> IN_HEAD
    p["shrink_w"] = nrm(ks[i], (IN_HEAD, IN_HEAD)); i += 1
    p["shrink_b"] = nrm(ks[i], (IN_HEAD,)); i += 1
    # heads (1x1 convs)
    p["cls_w"] = nrm(ks[i], (IN_HEAD, ANCHOR_NUMBER)); i += 1
    p["cls_b"] = nrm(ks[i], (ANCHOR_NUMBER,)); i += 1
    p["reg_w"] = nrm(ks[i], (IN_HEAD, 7 * ANCHOR_NUMBER)); i += 1
    p["reg_b"] = nrm(ks[i], (7 * ANCHOR_NUMBER,)); i += 1
    p["dir_w"] = nrm(ks[i], (IN_HEAD, NUM_BINS * ANCHOR_NUMBER)); i += 1
    p["dir_b"] = nrm(ks[i], (NUM_BINS * ANCHOR_NUMBER,)); i += 1
    return p


def prepare_collab_params(params, agent_modality_list):
    """Init-time weight assembly (depends only on params + agent order)."""
    K = IN_HEAD
    n_agents = len(agent_modality_list)

    # Fold the shrink conv into the concatenated cls/reg/dir heads (exact:
    # the shrink feature is never returned).
    heads_w = jnp.concatenate(
        [params["cls_w"], params["reg_w"], params["dir_w"]], axis=1)       # (K, HC)
    heads_b = jnp.concatenate(
        [params["cls_b"], params["reg_b"], params["dir_b"]], axis=0)       # (HC,)
    heads_wT_eff = heads_w.T @ params["shrink_w"].T                        # (HC, K)
    heads_bT_eff = (heads_w.T @ params["shrink_b"].reshape(K, 1)
                    + heads_b.reshape(-1, 1))                              # (HC, 1)

    # Block-diagonal per-agent projection with the occupancy head folded in
    # as one extra weight row per agent (slab padded to SLAB=40 rows so all
    # in-kernel slices stay 8-sublane aligned).
    occ_w = params["occ_w"]                                                # (K, 1)
    occ_b = params["occ_b"]                                                # (1,)
    w_bd = jnp.zeros((n_agents * SLAB, n_agents * CIN_PAD), jnp.float32)
    b_bd = jnp.zeros((n_agents * SLAB, 1), jnp.float32)
    for n, m in enumerate(agent_modality_list):
        cin = MOD_IN_CHANNELS[m]
        pw = params[f"proj_w_{m}"]                                         # (cin, K)
        pb = params[f"proj_b_{m}"]                                         # (K,)
        slab_w = jnp.zeros((SLAB, CIN_PAD), jnp.float32)
        slab_w = slab_w.at[:K, :cin].set(pw.T)
        slab_w = slab_w.at[K, :cin].set((pw @ occ_w)[:, 0])                # occ row
        slab_b = jnp.zeros((SLAB, 1), jnp.float32)
        slab_b = slab_b.at[:K, 0].set(pb)
        slab_b = slab_b.at[K, 0].set(pb @ occ_w[:, 0] + occ_b[0])
        w_bd = w_bd.at[n * SLAB:(n + 1) * SLAB,
                       n * CIN_PAD:(n + 1) * CIN_PAD].set(slab_w)
        b_bd = b_bd.at[n * SLAB:(n + 1) * SLAB].set(slab_b)

    return {"w_bd": w_bd, "b_bd": b_bd,
            "heads_wT": heads_wT_eff, "heads_bT": heads_bT_eff,
            "n_agents": n_agents}


# ----------------------------------------------------------------------------
# Forward pass (per-call: only input stacking + one pallas_call)
# ----------------------------------------------------------------------------
def heter_pyramid_collab_forward(data_dict, prep):
    output_dict = {"pyramid": "collab"}
    agent_modality_list = data_dict["agent_modality_list"]
    S = H * W

    # TODO(synk): normalize_pairwise_tfm + warp_affine_simple (grid_sample
    # resampling into the ego frame) has no clean Pallas equivalent; identity
    # pairwise transforms are assumed so the warp is a no-op (single scene,
    # record_len = [N]).
    # TODO(synk): torchvision CenterCrop for camera modalities skipped
    # (crop ratio treated as 1.0, i.e. no crop/pad).

    # Stack per-agent inputs (NCHW -> (CIN_PAD, S)), concatenated along the
    # sublane axis to match the block-diagonal projection weight.
    counting = {m: 0 for m in MODALITY_NAMES}
    x_rows = []
    for m in agent_modality_list:
        x = data_dict[f"inputs_{m}"][counting[m]]                  # (Cin_m, H, W)
        counting[m] += 1
        cin = x.shape[0]
        x_rows.append(jnp.pad(x.reshape(cin, S), ((0, CIN_PAD - cin), (0, 0))))
    x_bd = jnp.concatenate(x_rows, axis=0)                         # (N*CIN_PAD, S)

    occ, heads = pyramid_collab_fused(
        x_bd, prep["w_bd"], prep["b_bd"], prep["heads_wT"], prep["heads_bT"],
        n_agents=prep["n_agents"])

    # Lane-dense transposed outputs give NCHW for free.
    n_cls = ANCHOR_NUMBER
    n_reg = 7 * ANCHOR_NUMBER
    cls_preds = heads[:n_cls].reshape(1, n_cls, H, W)
    reg_preds = heads[n_cls:n_cls + n_reg].reshape(1, n_reg, H, W)
    dir_preds = heads[n_cls + n_reg:].reshape(1, NUM_BINS * ANCHOR_NUMBER, H, W)
    occ_single_list = [occ.reshape(-1, 1, H, W)]                   # NCHW occ logits

    output_dict.update({
        "cls_preds": cls_preds,
        "reg_preds": reg_preds,
        "dir_preds": dir_preds,
        "occ_single_list": occ_single_list,
    })
    return output_dict


# ----------------------------------------------------------------------------
# Pure-JAX reference (same proxy math, un-folded weights) for sanity check
# ----------------------------------------------------------------------------
def reference_forward(data_dict, params):
    S = H * W
    counting = {m: 0 for m in MODALITY_NAMES}
    feats = []
    for m in data_dict["agent_modality_list"]:
        x = data_dict[f"inputs_{m}"][counting[m]]; counting[m] += 1
        cin = x.shape[0]
        x = x.reshape(cin, S).T                                    # (S, Cin)
        feats.append(x @ params[f"proj_w_{m}"] + params[f"proj_b_{m}"])
    feat = jnp.stack(feats)                                        # (N, S, K)
    scores = feat @ params["occ_w"] + params["occ_b"]              # (N, S, 1)
    wgt = jax.nn.softmax(scores, axis=0)
    fused = jnp.sum(wgt * feat, axis=0)                            # (S, K)
    shr = fused @ params["shrink_w"] + params["shrink_b"]
    cls = shr @ params["cls_w"] + params["cls_b"]
    reg = shr @ params["reg_w"] + params["reg_b"]
    dire = shr @ params["dir_w"] + params["dir_b"]

    def to_nchw(y):
        return jnp.transpose(y.reshape(1, H, W, -1), (0, 3, 1, 2))

    occ = jnp.transpose(scores.reshape(-1, H, W, 1), (0, 3, 1, 2))
    return {"cls_preds": to_nchw(cls), "reg_preds": to_nchw(reg),
            "dir_preds": to_nchw(dire), "occ_single_list": [occ]}


# ----------------------------------------------------------------------------
# Driver
# ----------------------------------------------------------------------------
if __name__ == "__main__":
    key = jax.random.PRNGKey(0)
    kp, k1, k2 = jax.random.split(key, 3)
    params = init_params(kp)

    # 3 agents in one scene: two m1 agents, one m2 agent (NCHW inputs)
    data_dict = {
        "agent_modality_list": ["m1", "m2", "m1"],
        "record_len": jnp.array([3], dtype=jnp.int32),
        "pairwise_t_matrix": jnp.tile(jnp.eye(4, dtype=jnp.float32),
                                      (1, 3, 3, 1, 1)),
        "inputs_m1": jax.random.normal(
            k1, (2, MOD_IN_CHANNELS["m1"], H, W), dtype=jnp.float32),
        "inputs_m2": jax.random.normal(
            k2, (1, MOD_IN_CHANNELS["m2"], H, W), dtype=jnp.float32),
    }

    # Init-time weight assembly (hoisted out of the per-call path).
    prep = prepare_collab_params(params, data_dict["agent_modality_list"])

    out = heter_pyramid_collab_forward(data_dict, prep)
    jax.block_until_ready(out["cls_preds"])
    jax.block_until_ready(out["reg_preds"])
    jax.block_until_ready(out["dir_preds"])
    jax.block_until_ready(out["occ_single_list"][0])

    assert out["cls_preds"].shape == (1, ANCHOR_NUMBER, H, W)
    assert out["reg_preds"].shape == (1, 7 * ANCHOR_NUMBER, H, W)
    assert out["dir_preds"].shape == (1, NUM_BINS * ANCHOR_NUMBER, H, W)
    assert out["occ_single_list"][0].shape == (3, 1, H, W)

    ref = reference_forward(data_dict, params)
    for k in ("cls_preds", "reg_preds", "dir_preds"):
        assert jnp.allclose(out[k], ref[k], atol=2e-2, rtol=2e-2), k
    assert jnp.allclose(out["occ_single_list"][0], ref["occ_single_list"][0],
                        atol=2e-2, rtol=2e-2), "occ"

    print("KERNEL_OK")
</pallas_src>

<mosaic_0001>
module attributes {stable_mosaic.version = 11 : i64} {
  func.func @_collab_kernel(%arg0: memref<24x256xf32, #tpu.memory_space<vmem>>, %arg1: memref<120x24xf32, #tpu.memory_space<vmem>>, %arg2: memref<120x1xf32, #tpu.memory_space<vmem>>, %arg3: memref<20x32xf32, #tpu.memory_space<vmem>>, %arg4: memref<20x1xf32, #tpu.memory_space<vmem>>, %arg5: memref<3x256xf32, #tpu.memory_space<vmem>>, %arg6: memref<20x256xf32, #tpu.memory_space<vmem>>) attributes {dimension_semantics = [], scalar_prefetch = 0 : i64, scratch_operands = 0 : i64, tpu.core_type = #tpu.core_type<tc>} {
    %c0 = arith.constant 0 : index
    %c0_0 = arith.constant 0 : index
    %0 = vector.load %arg1[%c0, %c0_0] : memref<120x24xf32, #tpu.memory_space<vmem>>, vector<120x24xf32>
    %c0_1 = arith.constant 0 : index
    %c0_2 = arith.constant 0 : index
    %1 = vector.load %arg0[%c0_1, %c0_2] : memref<24x256xf32, #tpu.memory_space<vmem>>, vector<24x256xf32>
    %cst = arith.constant dense<0.000000e+00> : vector<120x256xf32>
    %2 = tpu.matmul %0, %1, %cst {dimension_numbers = #tpu.dot_dimension_numbers<[1], [0], [0], [1], [0, 0, 1, 1], [], []>} : vector<120x24xf32>, vector<24x256xf32>, vector<120x256xf32> -> vector<120x256xf32>
    %c0_3 = arith.constant 0 : index
    %c0_4 = arith.constant 0 : index
    %3 = vector.load %arg2[%c0_3, %c0_4] : memref<120x1xf32, #tpu.memory_space<vmem>>, vector<120x1xf32>
    %4 = vector.broadcast %3 : vector<120x1xf32> to vector<120x256xf32>
    %5 = arith.addf %2, %4 : vector<120x256xf32>
    %6 = vector.extract_strided_slice %5 {offsets = [0, 0], sizes = [32, 256], strides = [1, 1]} : vector<120x256xf32> to vector<32x256xf32>
    %7 = vector.extract_strided_slice %5 {offsets = [40, 0], sizes = [32, 256], strides = [1, 1]} : vector<120x256xf32> to vector<32x256xf32>
    %8 = vector.extract_strided_slice %5 {offsets = [80, 0], sizes = [32, 256], strides = [1, 1]} : vector<120x256xf32> to vector<32x256xf32>
    %9 = vector.extract_strided_slice %5 {offsets = [32, 0], sizes = [1, 256], strides = [1, 1]} : vector<120x256xf32> to vector<1x256xf32>
    %10 = vector.extract_strided_slice %5 {offsets = [72, 0], sizes = [1, 256], strides = [1, 1]} : vector<120x256xf32> to vector<1x256xf32>
    %11 = vector.extract_strided_slice %5 {offsets = [112, 0], sizes = [1, 256], strides = [1, 1]} : vector<120x256xf32> to vector<1x256xf32>
    %12 = arith.maximumf %9, %10 : vector<1x256xf32>
    %13 = arith.maximumf %12, %11 : vector<1x256xf32>
    %14 = arith.subf %9, %13 : vector<1x256xf32>
    %15 = math.exp %14 : vector<1x256xf32>
    %16 = arith.subf %10, %13 : vector<1x256xf32>
    %17 = math.exp %16 : vector<1x256xf32>
    %18 = arith.subf %11, %13 : vector<1x256xf32>
    %19 = math.exp %18 : vector<1x256xf32>
    %20 = arith.addf %15, %17 : vector<1x256xf32>
    %21 = arith.addf %20, %19 : vector<1x256xf32>
    %22 = tpu.reciprocal %21 {approx = true} : vector<1x256xf32> -> vector<1x256xf32>
    %23 = arith.mulf %15, %22 : vector<1x256xf32>
    %24 = vector.broadcast %23 : vector<1x256xf32> to vector<32x256xf32>
    %25 = arith.mulf %24, %6 : vector<32x256xf32>
    %26 = arith.mulf %17, %22 : vector<1x256xf32>
    %27 = vector.broadcast %26 : vector<1x256xf32> to vector<32x256xf32>
    %28 = arith.mulf %27, %7 : vector<32x256xf32>
    %29 = arith.addf %25, %28 : vector<32x256xf32>
    %30 = arith.mulf %19, %22 : vector<1x256xf32>
    %31 = vector.broadcast %30 : vector<1x256xf32> to vector<32x256xf32>
    %32 = arith.mulf %31, %8 : vector<32x256xf32>
    %33 = arith.addf %29, %32 : vector<32x256xf32>
    %c0_5 = arith.constant 0 : index
    %c0_6 = arith.constant 0 : index
    %34 = vector.load %arg3[%c0_5, %c0_6] : memref<20x32xf32, #tpu.memory_space<vmem>>, vector<20x32xf32>
    %cst_7 = arith.constant dense<0.000000e+00> : vector<20x256xf32>
    %35 = tpu.matmul %34, %33, %cst_7 {dimension_numbers = #tpu.dot_dimension_numbers<[1], [0], [0], [1], [0, 0, 1, 1], [], []>} : vector<20x32xf32>, vector<32x256xf32>, vector<20x256xf32> -> vector<20x256xf32>
    %c0_8 = arith.constant 0 : index
    %c0_9 = arith.constant 0 : index
    %36 = vector.load %arg4[%c0_8, %c0_9] : memref<20x1xf32, #tpu.memory_space<vmem>>, vector<20x1xf32>
    %37 = vector.broadcast %36 : vector<20x1xf32> to vector<20x256xf32>
    %38 = arith.addf %35, %37 : vector<20x256xf32>
    %c0_10 = arith.constant 0 : index
    %c0_11 = arith.constant 0 : index
    %39 = vector.load %arg5[%c0_10, %c0_11] : memref<3x256xf32, #tpu.memory_space<vmem>>, vector<1x256xf32>
    tpu.vector_store %arg5[%c0_10, %c0_11], %9 {strides = array<i32>} : memref<3x256xf32, #tpu.memory_space<vmem>>, vector<1x256xf32>,
    %c1 = arith.constant 1 : index
    %c0_12 = arith.constant 0 : index
    %40 = vector.load %arg5[%c1, %c0_12] : memref<3x256xf32, #tpu.memory_space<vmem>>, vector<1x256xf32>
    tpu.vector_store %arg5[%c1, %c0_12], %10 {strides = array<i32>} : memref<3x256xf32, #tpu.memory_space<vmem>>, vector<1x256xf32>,
    %c2 = arith.constant 2 : index
    %c0_13 = arith.constant 0 : index
    %41 = vector.load %arg5[%c2, %c0_13] : memref<3x256xf32, #tpu.memory_space<vmem>>, vector<1x256xf32>
    tpu.vector_store %arg5[%c2, %c0_13], %11 {strides = array<i32>} : memref<3x256xf32, #tpu.memory_space<vmem>>, vector<1x256xf32>,
    %c0_14 = arith.constant 0 : index
    %c0_15 = arith.constant 0 : index
    %42 = vector.load %arg6[%c0_14, %c0_15] : memref<20x256xf32, #tpu.memory_space<vmem>>, vector<20x256xf32>
    tpu.vector_store %arg6[%c0_14, %c0_15], %38 {strides = array<i32>} : memref<20x256xf32, #tpu.memory_space<vmem>>, vector<20x256xf32>,
    return
  }
}

</mosaic_0001>

<llo_original>
// kernel: tpu_custom_call.1
$region0: #{tpu_custom_call.1}
  #allocation0 [shape = 'u32[]', space=smem, size = 0x4, offset = 0x4, fixed_abs, tag = 'smem constant byte address 0x4 - core index']
  #allocation1 [shape = 'u32[144,128]{1,0:T(1,128)}', space=vmem, size = 0x12000, scoped, tag = 'internal scratch']
  %s0 = inlined_call_operand.vmem [shape: f32[24,256], index: 0, kind: input, shape index: {}]
  %s1 = inlined_call_operand.vmem [shape: f32[120,24], index: 1, kind: input, shape index: {}]
  %s2 = inlined_call_operand.vmem [shape: f32[120,1], index: 2, kind: input, shape index: {}]
  %s3 = inlined_call_operand.vmem [shape: f32[20,32], index: 3, kind: input, shape index: {}]
  %s4 = inlined_call_operand.vmem [shape: f32[20,1], index: 4, kind: input, shape index: {}]
  %s5 = inlined_call_operand.hbm [shape: f32[3,256], index: 5, kind: output, shape index: {0}]
  %s6 = inlined_call_operand.hbm [shape: f32[20,256], index: 6, kind: output, shape index: {1}]
  %7 = xla_tuple %s5, %s6
  %s8 = sld [smem:[#allocation0]]
  $region38: #{tpu_custom_call.1} parent=0
    _
  %s10 = ssub.s32 1, %s8
  %s11 = scalar_select 0, %s10, %s8
  $region1: #{tpu_custom_call.1} parent=0
    #allocation2 [shape = 'u8[4096]{0}', space=vmem, size = 0x1000, scoped, tag = 'output window, operand 0, single buffered']
    #allocation3 [shape = 's32[1]{0}', space=sflag, size = 0x4, scoped, tag = 'scoped memory for tpu_custom_call.1']
    #allocation4 [shape = 'u8[24576]{0}', space=vmem, size = 0x6000, scoped, tag = 'output window, operand 1, single buffered']
    #allocation5 [shape = 's32[1]{0}', space=sflag, size = 0x4, scoped, tag = 'scoped memory for tpu_custom_call.1']
    %12 = vsyncpa [#allocation3], 0
    %13 = vsyncpa [#allocation5], 0
    // Predicated region
    $region2: #{tpu_custom_call.1} parent=1 // pred_check
      _
    $region3: #{tpu_custom_call.1} parent=1 // pred_check_branch
      %15 = sbr.rel (0) target = $region5
    $region4: #{tpu_custom_call.1} parent=1 // pred_region
      _
    $region5: #{tpu_custom_call.1} parent=1 // pred_fallthru
      _
    // Predicated region
    $region6: #{tpu_custom_call.1} parent=1 // pred_check
      _
    $region7: #{tpu_custom_call.1} parent=1 // pred_check_branch
      %17 = sbr.rel (0) target = $region9
    $region8: #{tpu_custom_call.1} parent=1 // pred_region
      _
    $region9: #{tpu_custom_call.1} parent=1 // pred_fallthru
      _
    // Predicated region
    $region10: #{tpu_custom_call.1} parent=1 // pred_check
      _
    $region11: #{tpu_custom_call.1} parent=1 // pred_check_branch
      %19 = sbr.rel (0) target = $region13
    $region12: #{tpu_custom_call.1} parent=1 // pred_region
      _
    $region13: #{tpu_custom_call.1} parent=1 // pred_fallthru
      _
    // Predicated region
    $region14: #{tpu_custom_call.1} parent=1 // pred_check
      _
    $region15: #{tpu_custom_call.1} parent=1 // pred_check_branch
      %21 = sbr.rel (0) target = $region17
    $region16: #{tpu_custom_call.1} parent=1 // pred_region
      _
    $region17: #{tpu_custom_call.1} parent=1 // pred_fallthru
      _
    // Predicated region
    $region18: #{tpu_custom_call.1} parent=1 // pred_check
      _
    $region19: #{tpu_custom_call.1} parent=1 // pred_check_branch
      %23 = sbr.rel (0) target = $region21
    $region20: #{tpu_custom_call.1} parent=1 // pred_region
      _
    $region21: #{tpu_custom_call.1} parent=1 // pred_fallthru
      _
    %v24 = vld [vmem:[%s1] sm:$0xff]
    %v25 = vld [vmem:[%s1 + $0x8] sm:$0xff]
    %v26 = vld [vmem:[%s1 + $0x10] sm:$0xff]
    %v27 = vld [vmem:[%s1 + $0x18] sm:$0xff]
    %v28 = vld [vmem:[%s1 + $0x20] sm:$0xff]
    %v29 = vld [vmem:[%s1 + $0x28] sm:$0xff]
    %v30 = vld [vmem:[%s1 + $0x30] sm:$0xff]
    %v31 = vld [vmem:[%s1 + $0x38] sm:$0xff]
    %v32 = vld [vmem:[%s1 + $0x40] sm:$0xff]
    %v33 = vld [vmem:[%s1 + $0x48] sm:$0xff]
    %v34 = vld [vmem:[%s1 + $0x50] sm:$0xff]
    %v35 = vld [vmem:[%s1 + $0x58] sm:$0xff]
    %v36 = vld [vmem:[%s1 + $0x60] sm:$0xff]
    %v37 = vld [vmem:[%s1 + $0x68] sm:$0xff]
    %v38 = vld [vmem:[%s1 + $0x70] sm:$0xff]
    %v39 = vld [vmem:[%s0] sm:$0xff]
    %v40 = vld [vmem:[%s0 + $0x8] sm:$0xff]
    %v41 = vld [vmem:[%s0 + $0x10] sm:$0xff]
    %v42 = vld [vmem:[%s0 + $0x18] sm:$0xff]
    %v43 = vld [vmem:[%s0 + $0x20] sm:$0xff]
    %v44 = vld [vmem:[%s0 + $0x28] sm:$0xff]
    %v45 = vld [vmem:[%s2] sm:$0xff]
    %v46 = vld [vmem:[%s2 + $0x8] sm:$0xff]
    %v47 = vld [vmem:[%s2 + $0x10] sm:$0xff]
    %v48 = vld [vmem:[%s2 + $0x18] sm:$0xff]
    %v49 = vld [vmem:[%s2 + $0x20] sm:$0xff]
    %v50 = vld [vmem:[%s2 + $0x28] sm:$0xff]
    %v51 = vld [vmem:[%s2 + $0x30] sm:$0xff]
    %v52 = vld [vmem:[%s2 + $0x38] sm:$0xff]
    %v53 = vld [vmem:[%s2 + $0x40] sm:$0xff]
    %v54 = vld [vmem:[%s2 + $0x48] sm:$0xff]
    %v55 = vld [vmem:[%s2 + $0x50] sm:$0xff]
    %v56 = vld [vmem:[%s2 + $0x58] sm:$0xff]
    %v57 = vld [vmem:[%s2 + $0x60] sm:$0xff]
    %v58 = vld [vmem:[%s2 + $0x68] sm:$0xff]
    %v59 = vld [vmem:[%s2 + $0x70] sm:$0xff]
    %61 = vset.pattern.permute.xlu0 0
    %62 = vperm.xlu0 %61, %v45
    %v63 = vpop.permute.xlu0 %62
    %66 = vset.pattern.permute.xlu0 0
    %67 = vperm.xlu0 %66, %v46
    %v68 = vpop.permute.xlu0 %67
    %71 = vset.pattern.permute.xlu0 0
    %72 = vperm.xlu0 %71, %v47
    %v73 = vpop.permute.xlu0 %72
    %76 = vset.pattern.permute.xlu0 0
    %77 = vperm.xlu0 %76, %v48
    %v78 = vpop.permute.xlu0 %77
    %81 = vset.pattern.permute.xlu0 0
    %82 = vperm.xlu0 %81, %v49
    %v83 = vpop.permute.xlu0 %82
    %86 = vset.pattern.permute.xlu0 0
    %87 = vperm.xlu0 %86, %v50
    %v88 = vpop.permute.xlu0 %87
    %91 = vset.pattern.permute.xlu0 0
    %92 = vperm.xlu0 %91, %v51
    %v93 = vpop.permute.xlu0 %92
    %96 = vset.pattern.permute.xlu0 0
    %97 = vperm.xlu0 %96, %v52
    %v98 = vpop.permute.xlu0 %97
    %101 = vset.pattern.permute.xlu0 0
    %102 = vperm.xlu0 %101, %v53
    %v103 = vpop.permute.xlu0 %102
    %106 = vset.pattern.permute.xlu0 0
    %107 = vperm.xlu0 %106, %v54
    %v108 = vpop.permute.xlu0 %107
    %111 = vset.pattern.permute.xlu0 0
    %112 = vperm.xlu0 %111, %v55
    %v113 = vpop.permute.xlu0 %112
    %116 = vset.pattern.permute.xlu0 0
    %117 = vperm.xlu0 %116, %v56
    %v118 = vpop.permute.xlu0 %117
    %121 = vset.pattern.permute.xlu0 0
    %122 = vperm.xlu0 %121, %v57
    %v123 = vpop.permute.xlu0 %122
    %126 = vset.pattern.permute.xlu0 0
    %127 = vperm.xlu0 %126, %v58
    %v128 = vpop.permute.xlu0 %127
    %131 = vset.pattern.permute.xlu0 0
    %132 = vperm.xlu0 %131, %v59
    %v133 = vpop.permute.xlu0 %132
    %vm135 = vcmask 195584
    %v137 = vsel %vm135, %v24, 0
    %v140 = vsel %vm135, %v25, 0
    %v143 = vsel %vm135, %v26, 0
    %v146 = vsel %vm135, %v27, 0
    %v149 = vsel %vm135, %v28, 0
    %v152 = vsel %vm135, %v29, 0
    %v155 = vsel %vm135, %v30, 0
    %v158 = vsel %vm135, %v31, 0
    %v161 = vsel %vm135, %v32, 0
    %v164 = vsel %vm135, %v33, 0
    %v167 = vsel %vm135, %v34, 0
    %v170 = vsel %vm135, %v35, 0
    %v173 = vsel %vm135, %v36, 0
    %v176 = vsel %vm135, %v37, 0
    %v179 = vsel %vm135, %v38, 0
    %181 = vmatprep.subr.mxu0 0.0
    %182 = vmatpush1.msra.mxu0 0.0
    %183 = vmatprep.subr.mxu0 0.0
    %184 = vmatpush1.msra.mxu0 0.0
    %185 = vmatprep.subr.mxu0 0.0
    %186 = vmatpush1.msra.mxu0 0.0
    %187 = vmatprep.subr.mxu0 0.0
    %188 = vmatpush1.msra.mxu0 0.0
    %189 = vmatprep.subr.mxu0 0.0
    %190 = vmatpush1.msra.mxu0 0.0
    %191 = vmatprep.subr.mxu0 0.0
    %192 = vmatpush1.msra.mxu0 0.0
    %193 = vmatprep.subr.mxu0 0.0
    %194 = vmatpush1.msra.mxu0 0.0
    %195 = vmatprep.subr.mxu0 0.0
    %196 = vmatpush1.msra.mxu0 0.0
    %197 = vmatprep.subr.mxu0 0.0
    %198 = vmatpush1.msra.mxu0 0.0
    %199 = vmatprep.subr.mxu0 0.0
    %200 = vmatpush1.msra.mxu0 0.0
    %201 = vmatprep.subr.mxu0 0.0
    %202 = vmatpush1.msra.mxu0 0.0
    %203 = vmatprep.subr.mxu0 0.0
    %204 = vmatpush1.msra.mxu0 0.0
    %205 = vmatprep.subr.mxu0 0.0
    %206 = vmatpush1.msra.mxu0 0.0
    %207 = vmatprep.subr.mxu0 %v44
    %208 = vmatpush1.msra.mxu0 %v43
    %209 = vmatprep.subr.mxu0 %v42
    %210 = vmatpush1.msra.mxu0 %v41
    %211 = vmatprep.subr.mxu0 %v40
    %212 = vmatpush1.msra.mxu0 %v39
    %213 = vmatprep.subr.mxu0 0.0
    %214 = vmatpush2.msra.mxu0 0.0
    %215 = vmatprep.subr.mxu0 0.0
    %216 = vmatpush2.msra.mxu0 0.0
    %217 = vmatprep.subr.mxu0 0.0
    %218 = vmatpush2.msra.mxu0 0.0
    %219 = vmatprep.subr.mxu0 0.0
    %220 = vmatpush2.msra.mxu0 0.0
    %221 = vmatprep.subr.mxu0 0.0
    %222 = vmatpush2.msra.mxu0 0.0
    %223 = vmatprep.subr.mxu0 0.0
    %224 = vmatpush2.msra.mxu0 0.0
    %225 = vmatprep.subr.mxu0 0.0
    %226 = vmatpush2.msra.mxu0 0.0
    %227 = vmatprep.subr.mxu0 0.0
    %228 = vmatpush2.msra.mxu0 0.0
    %229 = vmatprep.subr.mxu0 0.0
    %230 = vmatpush2.msra.mxu0 0.0
    %231 = vmatprep.subr.mxu0 0.0
    %232 = vmatpush2.msra.mxu0 0.0
    %233 = vmatprep.subr.mxu0 0.0
    %234 = vmatpush2.msra.mxu0 0.0
    %235 = vmatprep.subr.mxu0 0.0
    %236 = vmatpush2.msra.mxu0 0.0
    %237 = vmatprep.subr.mxu0 0.0
    %238 = vmatpush2.msra.mxu0 0.0
    %239 = vmatprep.subr.mxu0 0.0
    %240 = vmatpush2.msra.mxu0 0.0
    %241 = vmatprep.subr.mxu0 0.0
    %242 = vmatpush2.msra.mxu0 0.0
    %243 = vmatprep.subr.mxu0 0.0
    %244 = vmatpush2.msra.mxu0 0.0
    %245 = vmatprep.mubr.f32.mxu0 0.0
    %246 = vmatmul.mubr.f32.gmra.mxu0 %v137
    %v247 = vpop.f32.mrf.mxu0
    %v248 = vadd.f32 %v63, %v247
    %v249 = vpop.f32.mrf.mxu0
    %v250 = vadd.f32 %v63, %v249
    %251 = vmatprep.mubr.f32.mxu0 0.0
    %252 = vmatmul.mubr.f32.gmra.mxu0 %v140
    %v253 = vpop.f32.mrf.mxu0
    %v254 = vadd.f32 %v68, %v253
    %v255 = vpop.f32.mrf.mxu0
    %v256 = vadd.f32 %v68, %v255
    %257 = vmatprep.mubr.f32.mxu0 0.0
    %258 = vmatmul.mubr.f32.gmra.mxu0 %v143
    %v259 = vpop.f32.mrf.mxu0
    %v260 = vadd.f32 %v73, %v259
    %v261 = vpop.f32.mrf.mxu0
    %v262 = vadd.f32 %v73, %v261
    %263 = vmatprep.mubr.f32.mxu0 0.0
    %264 = vmatmul.mubr.f32.gmra.mxu0 %v146
    %v265 = vpop.f32.mrf.mxu0
    %v266 = vadd.f32 %v78, %v265
    %v267 = vpop.f32.mrf.mxu0
    %v268 = vadd.f32 %v78, %v267
    %269 = vmatprep.mubr.f32.mxu0 0.0
    %270 = vmatmul.mubr.f32.gmra.mxu0 %v149
    %v271 = vpop.f32.mrf.mxu0
    %v272 = vadd.f32 %v83, %v271
    %v273 = vpop.f32.mrf.mxu0
    %v274 = vadd.f32 %v83, %v273
    %275 = vmatprep.mubr.f32.mxu0 0.0
    %276 = vmatmul.mubr.f32.gmra.mxu0 %v152
    %v277 = vpop.f32.mrf.mxu0
    %v278 = vadd.f32 %v88, %v277
    %v279 = vpop.f32.mrf.mxu0
    %v280 = vadd.f32 %v88, %v279
    %281 = vmatprep.mubr.f32.mxu0 0.0
    %282 = vmatmul.mubr.f32.gmra.mxu0 %v155
    %v283 = vpop.f32.mrf.mxu0
    %v284 = vadd.f32 %v93, %v283
    %v285 = vpop.f32.mrf.mxu0
    %v286 = vadd.f32 %v93, %v285
    %287 = vmatprep.mubr.f32.mxu0 0.0
    %288 = vmatmul.mubr.f32.gmra.mxu0 %v158
    %v289 = vpop.f32.mrf.mxu0
    %v290 = vadd.f32 %v98, %v289
    %v291 = vpop.f32.mrf.mxu0
    %v292 = vadd.f32 %v98, %v291
    %293 = vmatprep.mubr.f32.mxu0 0.0
    %294 = vmatmul.mubr.f32.gmra.mxu0 %v161
    %v295 = vpop.f32.mrf.mxu0
    %v296 = vadd.f32 %v103, %v295
    %v297 = vpop.f32.mrf.mxu0
    %v298 = vadd.f32 %v103, %v297
    %299 = vmatprep.mubr.f32.mxu0 0.0
    %300 = vmatmul.mubr.f32.gmra.mxu0 %v164
    %v301 = vpop.f32.mrf.mxu0
    %v302 = vadd.f32 %v108, %v301
    %v303 = vpop.f32.mrf.mxu0
    %v304 = vadd.f32 %v108, %v303
    %305 = vmatprep.mubr.f32.mxu0 0.0
    %306 = vmatmul.mubr.f32.gmra.mxu0 %v167
    %v307 = vpop.f32.mrf.mxu0
    %v308 = vadd.f32 %v113, %v307
    %v309 = vpop.f32.mrf.mxu0
    %v310 = vadd.f32 %v113, %v309
    %311 = vmatprep.mubr.f32.mxu0 0.0
    %312 = vmatmul.mubr.f32.gmra.mxu0 %v170
    %v313 = vpop.f32.mrf.mxu0
    %v314 = vadd.f32 %v118, %v313
    %v315 = vpop.f32.mrf.mxu0
    %v316 = vadd.f32 %v118, %v315
    %317 = vmatprep.mubr.f32.mxu0 0.0
    %318 = vmatmul.mubr.f32.gmra.mxu0 %v173
    %v319 = vpop.f32.mrf.mxu0
    %v320 = vadd.f32 %v123, %v319
    %v321 = vpop.f32.mrf.mxu0
    %v322 = vadd.f32 %v123, %v321
    %323 = vmatprep.mubr.f32.mxu0 0.0
    %324 = vmatmul.mubr.f32.gmra.mxu0 %v176
    %v325 = vpop.f32.mrf.mxu0
    %v326 = vadd.f32 %v128, %v325
    %v327 = vpop.f32.mrf.mxu0
    %v328 = vadd.f32 %v128, %v327
    %329 = vmatprep.mubr.f32.mxu0 0.0
    %330 = vmatmul.mubr.f32.gmra.mxu0 %v179
    %v331 = vpop.f32.mrf.mxu0
    %v332 = vadd.f32 %v133, %v331
    %v333 = vpop.f32.mrf.mxu0
    %v334 = vadd.f32 %v133, %v333
    %335 = vdwg.mxu0
    %v336 = vmax.f32 %v272, %v302
    %v337 = vmax.f32 %v274, %v304
    %v338 = vmax.f32 %v336, %v332
    %v339 = vmax.f32 %v337, %v334
    %v340 = vsub.f32 %v272, %v338
    %v341 = vsub.f32 %v274, %v339
    %v342 = vmul.f32 %v340, 1.442695
    %v343 = vpow.pop %v342
    %v344 = vmul.f32 %v341, 1.442695
    %v345 = vpow.pop %v344
    %v346 = vsub.f32 %v302, %v338
    %v347 = vsub.f32 %v304, %v339
    %v348 = vmul.f32 %v346, 1.442695
    %v349 = vpow.pop %v348
    %v350 = vmul.f32 %v347, 1.442695
    %v351 = vpow.pop %v350
    %v352 = vsub.f32 %v332, %v338
    %v353 = vsub.f32 %v334, %v339
    %v354 = vmul.f32 %v352, 1.442695
    %v355 = vpow.pop %v354
    %v356 = vmul.f32 %v353, 1.442695
    %v357 = vpow.pop %v356
    %v358 = vadd.f32 %v343, %v349
    %v359 = vadd.f32 %v345, %v351
    %v360 = vadd.f32 %v358, %v355
    %v361 = vadd.f32 %v359, %v357
    %v362 = vrcp.pop %v360
    %v363 = vrcp.pop %v361
    %v364 = vmul.f32 %v343, %v362
    %v365 = vmul.f32 %v345, %v363
    %v366 = vlaneseq
    %v367 = vshrl.u32 %v366, 7
    %v368 = vsub.s32 0, %v367
    %v369 = vrot.slane %v364, %v368
    %v370 = vlaneseq
    %v371 = vshrl.u32 %v370, 7
    %v372 = vsub.s32 0, %v371
    %v373 = vrot.slane %v365, %v372
    %v374 = vmul.f32 %v369, %v248
    %v375 = vmul.f32 %v373, %v250
    %v376 = vmul.f32 %v369, %v254
    %v377 = vmul.f32 %v373, %v256
    %v378 = vmul.f32 %v369, %v260
    %v379 = vmul.f32 %v373, %v262
    %v380 = vmul.f32 %v369, %v266
    %v381 = vmul.f32 %v373, %v268
    %v382 = vmul.f32 %v349, %v362
    %v383 = vmul.f32 %v351, %v363
    %v384 = vlaneseq
    %v385 = vshrl.u32 %v384, 7
    %v386 = vsub.s32 0, %v385
    %v387 = vrot.slane %v382, %v386
    %v388 = vlaneseq
    %v389 = vshrl.u32 %v388, 7
    %v390 = vsub.s32 0, %v389
    %v391 = vrot.slane %v383, %v390
    %v392 = vmul.f32 %v387, %v278
    %v393 = vmul.f32 %v391, %v280
    %v394 = vmul.f32 %v387, %v284
    %v395 = vmul.f32 %v391, %v286
    %v396 = vmul.f32 %v387, %v290
    %v397 = vmul.f32 %v391, %v292
    %v398 = vmul.f32 %v387, %v296
    %v399 = vmul.f32 %v391, %v298
    %v400 = vadd.f32 %v374, %v392
    %v401 = vadd.f32 %v375, %v393
    %v402 = vadd.f32 %v376, %v394
    %v403 = vadd.f32 %v377, %v395
    %v404 = vadd.f32 %v378, %v396
    %v405 = vadd.f32 %v379, %v397
    %v406 = vadd.f32 %v380, %v398
    %v407 = vadd.f32 %v381, %v399
    %v408 = vmul.f32 %v355, %v362
    %v409 = vmul.f32 %v357, %v363
    %v410 = vlaneseq
    %v411 = vshrl.u32 %v410, 7
    %v412 = vsub.s32 0, %v411
    %v413 = vrot.slane %v408, %v412
    %v414 = vlaneseq
    %v415 = vshrl.u32 %v414, 7
    %v416 = vsub.s32 0, %v415
    %v417 = vrot.slane %v409, %v416
    %v418 = vmul.f32 %v413, %v308
    %v419 = vmul.f32 %v417, %v310
    %v420 = vmul.f32 %v413, %v314
    %v421 = vmul.f32 %v417, %v316
    %v422 = vmul.f32 %v413, %v320
    %v423 = vmul.f32 %v417, %v322
    %v424 = vmul.f32 %v413, %v326
    %v425 = vmul.f32 %v417, %v328
    %v426 = vadd.f32 %v400, %v418
    %v427 = vadd.f32 %v401, %v419
    %v428 = vadd.f32 %v402, %v420
    %v429 = vadd.f32 %v403, %v421
    %v430 = vadd.f32 %v404, %v422
    %v431 = vadd.f32 %v405, %v423
    %v432 = vadd.f32 %v406, %v424
    %v433 = vadd.f32 %v407, %v425
    %v434 = vld [vmem:[%s3] sm:$0xff]
    %v435 = vld [vmem:[%s3 + $0x8] sm:$0xff]
    %v436 = vld [vmem:[%s3 + $0x10] sm:$0xf]
    %v437 = vld [vmem:[%s4] sm:$0xff]
    %v438 = vld [vmem:[%s4 + $0x8] sm:$0xff]
    %v439 = vld [vmem:[%s4 + $0x10] sm:$0xf]
    %441 = vset.pattern.permute.xlu0 0
    %442 = vperm.xlu0 %441, %v437
    %v443 = vpop.permute.xlu0 %442
    %446 = vset.pattern.permute.xlu0 0
    %447 = vperm.xlu0 %446, %v438
    %v448 = vpop.permute.xlu0 %447
    %451 = vset.pattern.permute.xlu0 0
    %452 = vperm.xlu0 %451, %v439
    %v453 = vpop.permute.xlu0 %452
    %vm455 = vcmask 261120
    %v457 = vsel %vm455, %v434, 0
    %v460 = vsel %vm455, %v435, 0
    %v463 = vsel %vm455, %v436, 0
    %465 = vmatprep.subr.mxu0 0.0
    %466 = vmatpush1.msra.mxu0 0.0
    %467 = vmatprep.subr.mxu0 0.0
    %468 = vmatpush1.msra.mxu0 0.0
    %469 = vmatprep.subr.mxu0 0.0
    %470 = vmatpush1.msra.mxu0 0.0
    %471 = vmatprep.subr.mxu0 0.0
    %472 = vmatpush1.msra.mxu0 0.0
    %473 = vmatprep.subr.mxu0 0.0
    %474 = vmatpush1.msra.mxu0 0.0
    %475 = vmatprep.subr.mxu0 0.0
    %476 = vmatpush1.msra.mxu0 0.0
    %477 = vmatprep.subr.mxu0 0.0
    %478 = vmatpush1.msra.mxu0 0.0
    %479 = vmatprep.subr.mxu0 0.0
    %480 = vmatpush1.msra.mxu0 0.0
    %481 = vmatprep.subr.mxu0 0.0
    %482 = vmatpush1.msra.mxu0 0.0
    %483 = vmatprep.subr.mxu0 0.0
    %484 = vmatpush1.msra.mxu0 0.0
    %485 = vmatprep.subr.mxu0 0.0
    %486 = vmatpush1.msra.mxu0 0.0
    %487 = vmatprep.subr.mxu0 0.0
    %488 = vmatpush1.msra.mxu0 0.0
    %489 = vmatprep.subr.mxu0 %v433
    %490 = vmatpush1.msra.mxu0 %v432
    %491 = vmatprep.subr.mxu0 %v431
    %492 = vmatpush1.msra.mxu0 %v430
    %493 = vmatprep.subr.mxu0 %v429
    %494 = vmatpush1.msra.mxu0 %v428
    %495 = vmatprep.subr.mxu0 %v427
    %496 = vmatpush1.msra.mxu0 %v426
    %497 = vmatprep.subr.mxu0 0.0
    %498 = vmatpush2.msra.mxu0 0.0
    %499 = vmatprep.subr.mxu0 0.0
    %500 = vmatpush2.msra.mxu0 0.0
    %501 = vmatprep.subr.mxu0 0.0
    %502 = vmatpush2.msra.mxu0 0.0
    %503 = vmatprep.subr.mxu0 0.0
    %504 = vmatpush2.msra.mxu0 0.0
    %505 = vmatprep.subr.mxu0 0.0
    %506 = vmatpush2.msra.mxu0 0.0
    %507 = vmatprep.subr.mxu0 0.0
    %508 = vmatpush2.msra.mxu0 0.0
    %509 = vmatprep.subr.mxu0 0.0
    %510 = vmatpush2.msra.mxu0 0.0
    %511 = vmatprep.subr.mxu0 0.0
    %512 = vmatpush2.msra.mxu0 0.0
    %513 = vmatprep.subr.mxu0 0.0
    %514 = vmatpush2.msra.mxu0 0.0
    %515 = vmatprep.subr.mxu0 0.0
    %516 = vmatpush2.msra.mxu0 0.0
    %517 = vmatprep.subr.mxu0 0.0
    %518 = vmatpush2.msra.mxu0 0.0
    %519 = vmatprep.subr.mxu0 0.0
    %520 = vmatpush2.msra.mxu0 0.0
    %521 = vmatprep.subr.mxu0 0.0
    %522 = vmatpush2.msra.mxu0 0.0
    %523 = vmatprep.subr.mxu0 0.0
    %524 = vmatpush2.msra.mxu0 0.0
    %525 = vmatprep.subr.mxu0 0.0
    %526 = vmatpush2.msra.mxu0 0.0
    %527 = vmatprep.subr.mxu0 0.0
    %528 = vmatpush2.msra.mxu0 0.0
    %529 = vmatprep.mubr.f32.mxu0 0.0
    %530 = vmatmul.mubr.f32.gmra.mxu0 %v457
    %v531 = vpop.f32.mrf.mxu0
    %v532 = vadd.f32 %v443, %v531
    %v533 = vpop.f32.mrf.mxu0
    %v534 = vadd.f32 %v443, %v533
    %535 = vmatprep.mubr.f32.mxu0 0.0
    %536 = vmatmul.mubr.f32.gmra.mxu0 %v460
    %v537 = vpop.f32.mrf.mxu0
    %v538 = vadd.f32 %v448, %v537
    %v539 = vpop.f32.mrf.mxu0
    %v540 = vadd.f32 %v448, %v539
    %541 = vmatprep.mubr.f32.mxu0 0.0
    %542 = vmatmul.mubr.f32.gmra.mxu0 %v463
    %v543 = vpop.f32.mrf.mxu0
    %v544 = vadd.f32 %v453, %v543
    %v545 = vpop.f32.mrf.mxu0
    %v546 = vadd.f32 %v453, %v545
    %547 = vdwg.mxu0
    %v550 = vcombine.low %v272, %v274
    %v552 = vunpack.c.l.s4 1966171168
    %v553 = vunpack.c.0.s8 %v552
    %v554 = vlaneseq
    %v555 = vshrl.u32 %v554, 7
    %v556 = vsub.s32 %v553, %v555
    %v557 = vrot.slane %v550, %v556
    %v559 = vunpack.c.l.s4 1966171168
    %v560 = vunpack.c.0.s8 %v559
    %v561 = vlaneseq
    %v562 = vshrl.u32 %v561, 7
    %v563 = vsub.s32 %v560, %v562
    %v564 = vrot.slane %v557, %v563
    %v566 = vlaneseq
    %vm567 = vcmp.ge.s32.totalorder %v566, 0
    %vm568 = vcmp.lt.s32.totalorder %v566, 256
    %vm569 = vmand %vm567, %vm568
    %570 = vst.msk [vmem:[#allocation2] ss:$4 sm:$0x3] %vm569, %v564
    %v573 = vcombine.low %v302, %v304
    %v575 = vunpack.c.l.s4 1966171168
    %v576 = vunpack.c.0.s8 %v575
    %v577 = vlaneseq
    %v578 = vshrl.u32 %v577, 7
    %v579 = vsub.s32 %v576, %v578
    %v580 = vrot.slane %v573, %v579
    %v582 = vunpack.c.l.s4 1966171168
    %v583 = vunpack.c.0.s8 %v582
    %v584 = vlaneseq
    %v585 = vshrl.u32 %v584, 7
    %v586 = vsub.s32 %v583, %v585
    %v587 = vrot.slane %v580, %v586
    %s589 = scalar_lea.vmem [#allocation2], 1
    %590 = vst.msk [vmem:[%s589] ss:$4 sm:$0x3] %vm569, %v587
    %v593 = vcombine.low %v332, %v334
    %v595 = vunpack.c.l.s4 1966171168
    %v596 = vunpack.c.0.s8 %v595
    %v597 = vlaneseq
    %v598 = vshrl.u32 %v597, 7
    %v599 = vsub.s32 %v596, %v598
    %v600 = vrot.slane %v593, %v599
    %v602 = vunpack.c.l.s4 1966171168
    %v603 = vunpack.c.0.s8 %v602
    %v604 = vlaneseq
    %v605 = vshrl.u32 %v604, 7
    %v606 = vsub.s32 %v603, %v605
    %v607 = vrot.slane %v600, %v606
    %s609 = scalar_lea.vmem [#allocation2], 2
    %610 = vst.msk [vmem:[%s609] ss:$4 sm:$0x3] %vm569, %v607
    %611 = vst [vmem:[#allocation4] sm:$0xff] %v532
    %612 = vst [vmem:[#allocation4 + $0x8] sm:$0xff] %v534
    %613 = vst [vmem:[#allocation4 + $0x10] sm:$0xff] %v538
    %614 = vst [vmem:[#allocation4 + $0x18] sm:$0xff] %v540
    %615 = vst [vmem:[#allocation4 + $0x20] sm:$0xf] %v544
    %616 = vst [vmem:[#allocation4 + $0x28] sm:$0xf] %v546
    // Predicated region
    $region22: #{tpu_custom_call.1} parent=1 // pred_check
      _
    $region23: #{tpu_custom_call.1} parent=1 // pred_check_branch
      %618 = sbr.rel (0) target = $region25
    $region24: #{tpu_custom_call.1} parent=1 // pred_region
      %s620 = ssub.s32 128, 128
      %621 = vsyncadd [#allocation3], %s620
      %s623 = sshll.u32 [#allocation2], 4
      %s624 = int_to_ptr.vmem [resolvable:$true] %s623
      %626 = dma.vmem_to_hbm [thread:$0]  %s624, 128, %s5, [#allocation3]
    $region25: #{tpu_custom_call.1} parent=1 // pred_fallthru
      _
    // Predicated region
    $region26: #{tpu_custom_call.1} parent=1 // pred_check
      _
    $region27: #{tpu_custom_call.1} parent=1 // pred_check_branch
      %628 = sbr.rel (0) target = $region29
    $region28: #{tpu_custom_call.1} parent=1 // pred_region
      %s630 = ssub.s32 768, 768
      %631 = vsyncadd [#allocation5], %s630
      %s632 = sshll.u32 [#allocation4], 4
      %s633 = int_to_ptr.vmem [resolvable:$true] %s632
      %638 = dma.vmem_to_hbm [thread:$0]  %s633, 768, %s6, [#allocation5], 256, 256, 16
    $region29: #{tpu_custom_call.1} parent=1 // pred_fallthru
      _
    // Predicated region
    $region30: #{tpu_custom_call.1} parent=1 // pred_check
      _
    $region31: #{tpu_custom_call.1} parent=1 // pred_check_branch
      %640 = sbr.rel (0) target = $region33
    $region32: #{tpu_custom_call.1} parent=1 // pred_region
      %641 = dma.done [#allocation3], 128
    $region33: #{tpu_custom_call.1} parent=1 // pred_fallthru
      _
    // Predicated region
    $region34: #{tpu_custom_call.1} parent=1 // pred_check
      _
    $region35: #{tpu_custom_call.1} parent=1 // pred_check_branch
      %643 = sbr.rel (0) target = $region37
    $region36: #{tpu_custom_call.1} parent=1 // pred_region
      %644 = dma.done [#allocation5], 768
    $region37: #{tpu_custom_call.1} parent=1 // pred_fallthru
      _
    %645 = vsyncpa [#allocation3], 1
    %646 = vsyncpa [#allocation5], 1

</llo_original>
